<compile_context>
chip_gen: v7x
topology: tpu7x:2x2x1
jax: 0.10.0
libtpu: 0.0.40
codegen_flags: <defaults>
</compile_context>

<pallas_src>
import functools

import jax
import jax.numpy as jnp
from jax import lax
from jax.experimental import pallas as pl
from jax.experimental.pallas import tpu as pltpu

_EPS = 1e-12


# --------------------------------------------------------------------------
# Kernel
# --------------------------------------------------------------------------
def _rot_match_size_kernel(slab_ref, out_ref):
    """slab_ref: (15, TR, 128) component-major slab
         rows 0-2  pred xdir, 3-5 pred ydir,
         rows 6-8  gt size,
         rows 9-11 gt xdir, 12-14 gt ydir.
       out_ref: (TR, 128) chamfer metric per part (lane-dense)."""

    def comp(c):
        return slab_ref[c]                       # (TR, 128) dense tile

    def dot3(a, b):
        return a[0] * b[0] + a[1] * b[1] + a[2] * b[2]

    def sub3(a, b):
        return (a[0] - b[0], a[1] - b[1], a[2] - b[2])

    def scale3(a, s):
        return (a[0] * s, a[1] * s, a[2] * s)

    def cross3(a, b):
        return (a[1] * b[2] - a[2] * b[1],
                a[2] * b[0] - a[0] * b[2],
                a[0] * b[1] - a[1] * b[0])

    def normalize3(a):
        # rsqrt lowers to the EUP slot (free here); do not Newton-iterate.
        inv = lax.rsqrt(dot3(a, a) + _EPS)
        return scale3(a, inv)

    def gram_schmidt(x, y):
        b1 = normalize3(x)
        b2 = normalize3(sub3(y, scale3(b1, dot3(b1, y))))
        b3 = cross3(b1, b2)
        return b1, b2, b3

    # Consume the direction components immediately so their tiles die early
    # (keeps live vregs low at the larger tile size).
    p = gram_schmidt((comp(0), comp(1), comp(2)),
                     (comp(3), comp(4), comp(5)))     # pred orthonormal basis
    g = gram_schmidt((comp(9), comp(10), comp(11)),
                     (comp(12), comp(13), comp(14)))  # gt orthonormal basis
    h = (comp(6) * 0.5, comp(7) * 0.5, comp(8) * 0.5)  # gt half-sizes

    # Gram matrix M[a][b] = h_a * h_b * (p_a . g_b); 6 unique hh products.
    D = [[dot3(p[a], g[b]) for b in range(3)] for a in range(3)]
    hh = [[None] * 3 for _ in range(3)]
    for a in range(3):
        for b in range(a, 3):
            v = h[a] * h[b]
            hh[a][b] = v
            hh[b][a] = v
    M = [[hh[a][b] * D[a][b] for b in range(3)] for a in range(3)]
    S = hh[0][0] + hh[1][1] + hh[2][2]     # = ||corner||^2 (orthonormal bases)

    # For corners c_i = sum_a s_a h_a p_a, c_j = sum_b t_b h_b g_b:
    #   d_ij = 2S - 2*dot_ij,  dot_ij = sum_ab s_a t_b M_ab.
    # Antipodal corner pairs negate dot, so per half s-pattern
    #   max_j dot = max over half t of |r0(s) +- r1(s) +- r2(s)|
    #             = |r0(s)| + |r1(s)| + |r2(s)|,   r_b(s) = sum_a s_a M_ab,
    # and summing |x + s2 y + s3 z| over the 4 half sign patterns gives
    #   2*( max(|x+y|,|z|) + max(|x-y|,|z|) ).
    def abs_sign_sum(x, y, z):
        az = jnp.abs(z)
        return jnp.maximum(jnp.abs(x + y), az) + jnp.maximum(jnp.abs(x - y), az)

    # rows: r_b(s) = M[0][b] + s2*M[1][b] + s3*M[2][b]
    row_sum = (abs_sign_sum(M[0][0], M[1][0], M[2][0])
               + abs_sign_sum(M[0][1], M[1][1], M[2][1])
               + abs_sign_sum(M[0][2], M[1][2], M[2][2]))
    # cols: c_a(t) = M[a][0] + t2*M[a][1] + t3*M[a][2]
    col_sum = (abs_sign_sum(M[0][0], M[0][1], M[0][2])
               + abs_sign_sum(M[1][0], M[1][1], M[1][2])
               + abs_sign_sum(M[2][0], M[2][1], M[2][2]))

    # chamfer = mean_i min_j d_ij + mean_j min_i d_ij
    #         = 4S - 2*(mean_i max_j dot + mean_j max_i dot)
    #         = 4S - 0.5*(2*row_sum + 2*col_sum) = 4S - (row_sum + col_sum)
    out_ref[...] = 4.0 * S - (row_sum + col_sum)


# --------------------------------------------------------------------------
# Wrapper
# --------------------------------------------------------------------------
def _round_up(x, m):
    return ((x + m - 1) // m) * m


@functools.partial(jax.jit, static_argnames=("max_tile",))
def rot_match_size_metric(pred_xydir, gt_size, gt_xydir, *, max_tile=65536):
    """pred_xydir: (N,6), gt_size: (N,3), gt_xydir: (N,6) -> (N,) chamfer."""
    n = pred_xydir.shape[0]
    if n == 0:                                        # guard degenerate batch
        return jnp.zeros((0,), jnp.float32)

    min_tile = 1024                                   # 8 sublanes x 128 lanes f32
    n_unit = _round_up(n, min_tile)
    # Aim for >= ~4 grid steps so v7x's two TensorCores both get work and the
    # DMA pipeline has something to overlap, while capping block size.
    tile = min(max_tile, _round_up(-(-n_unit // 4), min_tile))
    tile = max(tile, min_tile)
    n_pad = _round_up(n_unit, tile)
    r_rows = n_pad // 128
    tr = tile // 128                                  # rows per grid step (mult of 8)
    grid = (n_pad // tile,)

    # Component-major slab: (15, N) -> pad -> (15, R, 128).  Zero padding is
    # benign (finite metric, sliced off below).  Because this whole function
    # is jitted, the transpose/concat/pad fuses into a single HBM copy pass.
    slab = jnp.concatenate([
        pred_xydir.astype(jnp.float32).T,             # (6, N)
        gt_size.astype(jnp.float32).T,                # (3, N)
        gt_xydir.astype(jnp.float32).T,               # (6, N)
    ], axis=0)
    slab = jnp.pad(slab, ((0, 0), (0, n_pad - n)))
    slab = slab.reshape(15, r_rows, 128)

    out = pl.pallas_call(
        _rot_match_size_kernel,
        out_shape=jax.ShapeDtypeStruct((r_rows, 128), jnp.float32),
        grid=grid,
        in_specs=[pl.BlockSpec((15, tr, 128), lambda i: (0, i, 0))],
        out_specs=pl.BlockSpec((tr, 128), lambda i: (i, 0)),
        compiler_params=pltpu.CompilerParams(
            dimension_semantics=("parallel",),         # shards over v7x's 2 TCs
            vmem_limit_bytes=32 * 1024 * 1024),        # safe on v5e's 16 MiB default
    )(slab)

    return out.reshape(-1)[:n]


class RotNetMetric:
    """JAX/Pallas port of CompNet's RotNetMetric (no learned parameters)."""

    def __init__(self, choice='Rot', relative_size=False, mode='train'):
        self.choice = choice
        self.relative_size = relative_size
        self.mode = mode
        print(f'Metric choice: {self.choice} in mode {self.mode}')

    def __call__(self, preds, labels):
        gt_box = labels['gt_box']                     # (B, P, 12)
        batch_size, num_parts, _ = gt_box.shape
        gt_box = gt_box.reshape(batch_size * num_parts, -1)
        gt_size = gt_box[:, 3:6]
        gt_xydir = gt_box[:, 6:12]
        pred_xydir = preds['xydir']                   # (B*P, 6)
        cd_dist = rot_match_size_metric(pred_xydir, gt_size, gt_xydir)
        if self.mode == 'test':
            cd_dist = cd_dist[None]                   # unsqueeze(0)
        return {'me-rotgtsize': cd_dist}


# --------------------------------------------------------------------------
# Plain-JAX reference (explicit corners + 8x8 chamfer) for validation.
# --------------------------------------------------------------------------
def _reference_chamfer(pred_xydir, gt_size, gt_xydir):
    def normalize(v):
        return v * lax.rsqrt(jnp.sum(v * v, -1, keepdims=True) + _EPS)

    def gs(xy):
        x, y = xy[:, :3], xy[:, 3:]
        b1 = normalize(x)
        b2 = normalize(y - jnp.sum(b1 * y, -1, keepdims=True) * b1)
        b3 = jnp.cross(b1, b2)
        return jnp.stack([b1, b2, b3], axis=-1)       # (N,3,3), columns = basis

    rp = gs(pred_xydir.astype(jnp.float32))
    rg = gs(gt_xydir.astype(jnp.float32))
    half = gt_size.astype(jnp.float32) * 0.5
    signs = jnp.array([[sx, sy, sz]
                       for sx in (-1.0, 1.0)
                       for sy in (-1.0, 1.0)
                       for sz in (-1.0, 1.0)], jnp.float32)       # (8,3)
    local = signs[None, :, :] * half[:, None, :]                  # (N,8,3)
    cp = jnp.einsum('nij,nkj->nki', rp, local)                    # (N,8,3)
    cg = jnp.einsum('nij,nkj->nki', rg, local)                    # (N,8,3)
    diff = cp[:, :, None, :] - cg[:, None, :, :]                  # (N,8,8,3)
    dist = jnp.sum(diff * diff, axis=-1)                          # (N,8,8)
    return dist.min(axis=2).mean(axis=1) + dist.min(axis=1).mean(axis=1)


if __name__ == "__main__":
    key = jax.random.PRNGKey(0)
    k_pred, k_size, k_gtxy, k_center, k_big = jax.random.split(key, 5)

    # --- small, module-shaped test (batch=2, parts=4) ---
    batch_size, num_parts = 2, 4
    n = batch_size * num_parts
    gt_center = jax.random.normal(k_center, (batch_size, num_parts, 3), jnp.float32)
    gt_size = jax.random.uniform(k_size, (batch_size, num_parts, 3), jnp.float32,
                                 minval=0.2, maxval=1.5)
    gt_xydir = jax.random.normal(k_gtxy, (batch_size, num_parts, 6), jnp.float32)
    gt_box = jnp.concatenate([gt_center, gt_size, gt_xydir], axis=-1)   # (2,4,12)
    pred_xydir = jax.random.normal(k_pred, (n, 6), jnp.float32)         # (8,6)

    metric = RotNetMetric(choice='Rot', relative_size=False, mode='train')
    metrics = metric({'xydir': pred_xydir}, {'gt_box': gt_box})
    cd = jax.block_until_ready(metrics['me-rotgtsize'])
    assert cd.shape == (n,)
    assert bool(jnp.all(jnp.isfinite(cd)))
    ref = _reference_chamfer(pred_xydir, gt_size.reshape(n, 3), gt_xydir.reshape(n, 6))
    assert bool(jnp.allclose(cd, ref, rtol=1e-3, atol=1e-3))

    # --- mid-size test: exercises N-padding and a multi-step grid ---
    n2 = 9000
    k1, k2, k3 = jax.random.split(k_big, 3)
    p2 = jax.random.normal(k1, (n2, 6), jnp.float32)
    s2 = jax.random.uniform(k2, (n2, 3), jnp.float32, minval=0.2, maxval=1.5)
    g2 = jax.random.normal(k3, (n2, 6), jnp.float32)
    cd2 = jax.block_until_ready(rot_match_size_metric(p2, s2, g2))
    assert cd2.shape == (n2,)
    assert bool(jnp.all(jnp.isfinite(cd2)))
    ref2 = _reference_chamfer(p2, s2, g2)
    assert bool(jnp.allclose(cd2, ref2, rtol=1e-3, atol=1e-3))

    # --- large test: exercises the 65536-part max tile (tr = 512 rows) ---
    n3 = 300000
    k4, k5, k6 = jax.random.split(k1, 3)
    p3 = jax.random.normal(k4, (n3, 6), jnp.float32)
    s3 = jax.random.uniform(k5, (n3, 3), jnp.float32, minval=0.2, maxval=1.5)
    g3 = jax.random.normal(k6, (n3, 6), jnp.float32)
    cd3 = jax.block_until_ready(rot_match_size_metric(p3, s3, g3))
    assert cd3.shape == (n3,)
    assert bool(jnp.all(jnp.isfinite(cd3)))
    ref3 = _reference_chamfer(p3[:512], s3[:512], g3[:512])
    assert bool(jnp.allclose(cd3[:512], ref3, rtol=1e-3, atol=1e-3))

    print("KERNEL_OK")
</pallas_src>

<mosaic_0001>
module attributes {stable_mosaic.version = 11 : i64} {
  func.func @_rot_match_size_kernel(%arg0: i32, %arg1: memref<15x8x128xf32, #tpu.memory_space<vmem>>, %arg2: memref<8x128xf32, #tpu.memory_space<vmem>>) attributes {dimension_semantics = [#tpu.dimension_semantics<parallel>], iteration_bounds = array<i64: 1>, scalar_prefetch = 0 : i64, scratch_operands = 0 : i64, tpu.core_type = #tpu.core_type<tc>, window_params = [{transform_indices = @transform_0, window_bounds = array<i64: 15, 8, 128>}, {transform_indices = @transform_1, window_bounds = array<i64: 8, 128>}]} {
    %c0 = arith.constant 0 : index
    %c0_0 = arith.constant 0 : index
    %c0_1 = arith.constant 0 : index
    %0 = vector.load %arg1[%c0, %c0_0, %c0_1] : memref<15x8x128xf32, #tpu.memory_space<vmem>>, vector<1x8x128xf32>
    %1 = vector.shape_cast %0 : vector<1x8x128xf32> to vector<8x128xf32>
    %c1 = arith.constant 1 : index
    %c0_2 = arith.constant 0 : index
    %c0_3 = arith.constant 0 : index
    %2 = vector.load %arg1[%c1, %c0_2, %c0_3] : memref<15x8x128xf32, #tpu.memory_space<vmem>>, vector<1x8x128xf32>
    %3 = vector.shape_cast %2 : vector<1x8x128xf32> to vector<8x128xf32>
    %c2 = arith.constant 2 : index
    %c0_4 = arith.constant 0 : index
    %c0_5 = arith.constant 0 : index
    %4 = vector.load %arg1[%c2, %c0_4, %c0_5] : memref<15x8x128xf32, #tpu.memory_space<vmem>>, vector<1x8x128xf32>
    %5 = vector.shape_cast %4 : vector<1x8x128xf32> to vector<8x128xf32>
    %c3 = arith.constant 3 : index
    %c0_6 = arith.constant 0 : index
    %c0_7 = arith.constant 0 : index
    %6 = vector.load %arg1[%c3, %c0_6, %c0_7] : memref<15x8x128xf32, #tpu.memory_space<vmem>>, vector<1x8x128xf32>
    %7 = vector.shape_cast %6 : vector<1x8x128xf32> to vector<8x128xf32>
    %c4 = arith.constant 4 : index
    %c0_8 = arith.constant 0 : index
    %c0_9 = arith.constant 0 : index
    %8 = vector.load %arg1[%c4, %c0_8, %c0_9] : memref<15x8x128xf32, #tpu.memory_space<vmem>>, vector<1x8x128xf32>
    %9 = vector.shape_cast %8 : vector<1x8x128xf32> to vector<8x128xf32>
    %c5 = arith.constant 5 : index
    %c0_10 = arith.constant 0 : index
    %c0_11 = arith.constant 0 : index
    %10 = vector.load %arg1[%c5, %c0_10, %c0_11] : memref<15x8x128xf32, #tpu.memory_space<vmem>>, vector<1x8x128xf32>
    %11 = vector.shape_cast %10 : vector<1x8x128xf32> to vector<8x128xf32>
    %12 = arith.mulf %1, %1 : vector<8x128xf32>
    %13 = arith.mulf %3, %3 : vector<8x128xf32>
    %14 = arith.addf %12, %13 : vector<8x128xf32>
    %15 = arith.mulf %5, %5 : vector<8x128xf32>
    %16 = arith.addf %14, %15 : vector<8x128xf32>
    %cst = arith.constant 9.99999996E-13 : f32
    %17 = vector.broadcast %cst : f32 to vector<8x128xf32>
    %18 = arith.addf %16, %17 : vector<8x128xf32>
    %19 = math.rsqrt %18 : vector<8x128xf32>
    %20 = arith.mulf %1, %19 : vector<8x128xf32>
    %21 = arith.mulf %3, %19 : vector<8x128xf32>
    %22 = arith.mulf %5, %19 : vector<8x128xf32>
    %23 = arith.mulf %20, %7 : vector<8x128xf32>
    %24 = arith.mulf %21, %9 : vector<8x128xf32>
    %25 = arith.addf %23, %24 : vector<8x128xf32>
    %26 = arith.mulf %22, %11 : vector<8x128xf32>
    %27 = arith.addf %25, %26 : vector<8x128xf32>
    %28 = arith.mulf %20, %27 : vector<8x128xf32>
    %29 = arith.mulf %21, %27 : vector<8x128xf32>
    %30 = arith.mulf %22, %27 : vector<8x128xf32>
    %31 = arith.subf %7, %28 : vector<8x128xf32>
    %32 = arith.subf %9, %29 : vector<8x128xf32>
    %33 = arith.subf %11, %30 : vector<8x128xf32>
    %34 = arith.mulf %31, %31 : vector<8x128xf32>
    %35 = arith.mulf %32, %32 : vector<8x128xf32>
    %36 = arith.addf %34, %35 : vector<8x128xf32>
    %37 = arith.mulf %33, %33 : vector<8x128xf32>
    %38 = arith.addf %36, %37 : vector<8x128xf32>
    %cst_12 = arith.constant 9.99999996E-13 : f32
    %39 = vector.broadcast %cst_12 : f32 to vector<8x128xf32>
    %40 = arith.addf %38, %39 : vector<8x128xf32>
    %41 = math.rsqrt %40 : vector<8x128xf32>
    %42 = arith.mulf %31, %41 : vector<8x128xf32>
    %43 = arith.mulf %32, %41 : vector<8x128xf32>
    %44 = arith.mulf %33, %41 : vector<8x128xf32>
    %45 = arith.mulf %21, %44 : vector<8x128xf32>
    %46 = arith.mulf %22, %43 : vector<8x128xf32>
    %47 = arith.subf %45, %46 : vector<8x128xf32>
    %48 = arith.mulf %22, %42 : vector<8x128xf32>
    %49 = arith.mulf %20, %44 : vector<8x128xf32>
    %50 = arith.subf %48, %49 : vector<8x128xf32>
    %51 = arith.mulf %20, %43 : vector<8x128xf32>
    %52 = arith.mulf %21, %42 : vector<8x128xf32>
    %53 = arith.subf %51, %52 : vector<8x128xf32>
    %c9 = arith.constant 9 : index
    %c0_13 = arith.constant 0 : index
    %c0_14 = arith.constant 0 : index
    %54 = vector.load %arg1[%c9, %c0_13, %c0_14] : memref<15x8x128xf32, #tpu.memory_space<vmem>>, vector<1x8x128xf32>
    %55 = vector.shape_cast %54 : vector<1x8x128xf32> to vector<8x128xf32>
    %c10 = arith.constant 10 : index
    %c0_15 = arith.constant 0 : index
    %c0_16 = arith.constant 0 : index
    %56 = vector.load %arg1[%c10, %c0_15, %c0_16] : memref<15x8x128xf32, #tpu.memory_space<vmem>>, vector<1x8x128xf32>
    %57 = vector.shape_cast %56 : vector<1x8x128xf32> to vector<8x128xf32>
    %c11 = arith.constant 11 : index
    %c0_17 = arith.constant 0 : index
    %c0_18 = arith.constant 0 : index
    %58 = vector.load %arg1[%c11, %c0_17, %c0_18] : memref<15x8x128xf32, #tpu.memory_space<vmem>>, vector<1x8x128xf32>
    %59 = vector.shape_cast %58 : vector<1x8x128xf32> to vector<8x128xf32>
    %c12 = arith.constant 12 : index
    %c0_19 = arith.constant 0 : index
    %c0_20 = arith.constant 0 : index
    %60 = vector.load %arg1[%c12, %c0_19, %c0_20] : memref<15x8x128xf32, #tpu.memory_space<vmem>>, vector<1x8x128xf32>
    %61 = vector.shape_cast %60 : vector<1x8x128xf32> to vector<8x128xf32>
    %c13 = arith.constant 13 : index
    %c0_21 = arith.constant 0 : index
    %c0_22 = arith.constant 0 : index
    %62 = vector.load %arg1[%c13, %c0_21, %c0_22] : memref<15x8x128xf32, #tpu.memory_space<vmem>>, vector<1x8x128xf32>
    %63 = vector.shape_cast %62 : vector<1x8x128xf32> to vector<8x128xf32>
    %c14 = arith.constant 14 : index
    %c0_23 = arith.constant 0 : index
    %c0_24 = arith.constant 0 : index
    %64 = vector.load %arg1[%c14, %c0_23, %c0_24] : memref<15x8x128xf32, #tpu.memory_space<vmem>>, vector<1x8x128xf32>
    %65 = vector.shape_cast %64 : vector<1x8x128xf32> to vector<8x128xf32>
    %66 = arith.mulf %55, %55 : vector<8x128xf32>
    %67 = arith.mulf %57, %57 : vector<8x128xf32>
    %68 = arith.addf %66, %67 : vector<8x128xf32>
    %69 = arith.mulf %59, %59 : vector<8x128xf32>
    %70 = arith.addf %68, %69 : vector<8x128xf32>
    %cst_25 = arith.constant 9.99999996E-13 : f32
    %71 = vector.broadcast %cst_25 : f32 to vector<8x128xf32>
    %72 = arith.addf %70, %71 : vector<8x128xf32>
    %73 = math.rsqrt %72 : vector<8x128xf32>
    %74 = arith.mulf %55, %73 : vector<8x128xf32>
    %75 = arith.mulf %57, %73 : vector<8x128xf32>
    %76 = arith.mulf %59, %73 : vector<8x128xf32>
    %77 = arith.mulf %74, %61 : vector<8x128xf32>
    %78 = arith.mulf %75, %63 : vector<8x128xf32>
    %79 = arith.addf %77, %78 : vector<8x128xf32>
    %80 = arith.mulf %76, %65 : vector<8x128xf32>
    %81 = arith.addf %79, %80 : vector<8x128xf32>
    %82 = arith.mulf %74, %81 : vector<8x128xf32>
    %83 = arith.mulf %75, %81 : vector<8x128xf32>
    %84 = arith.mulf %76, %81 : vector<8x128xf32>
    %85 = arith.subf %61, %82 : vector<8x128xf32>
    %86 = arith.subf %63, %83 : vector<8x128xf32>
    %87 = arith.subf %65, %84 : vector<8x128xf32>
    %88 = arith.mulf %85, %85 : vector<8x128xf32>
    %89 = arith.mulf %86, %86 : vector<8x128xf32>
    %90 = arith.addf %88, %89 : vector<8x128xf32>
    %91 = arith.mulf %87, %87 : vector<8x128xf32>
    %92 = arith.addf %90, %91 : vector<8x128xf32>
    %cst_26 = arith.constant 9.99999996E-13 : f32
    %93 = vector.broadcast %cst_26 : f32 to vector<8x128xf32>
    %94 = arith.addf %92, %93 : vector<8x128xf32>
    %95 = math.rsqrt %94 : vector<8x128xf32>
    %96 = arith.mulf %85, %95 : vector<8x128xf32>
    %97 = arith.mulf %86, %95 : vector<8x128xf32>
    %98 = arith.mulf %87, %95 : vector<8x128xf32>
    %99 = arith.mulf %75, %98 : vector<8x128xf32>
    %100 = arith.mulf %76, %97 : vector<8x128xf32>
    %101 = arith.subf %99, %100 : vector<8x128xf32>
    %102 = arith.mulf %76, %96 : vector<8x128xf32>
    %103 = arith.mulf %74, %98 : vector<8x128xf32>
    %104 = arith.subf %102, %103 : vector<8x128xf32>
    %105 = arith.mulf %74, %97 : vector<8x128xf32>
    %106 = arith.mulf %75, %96 : vector<8x128xf32>
    %107 = arith.subf %105, %106 : vector<8x128xf32>
    %c6 = arith.constant 6 : index
    %c0_27 = arith.constant 0 : index
    %c0_28 = arith.constant 0 : index
    %108 = vector.load %arg1[%c6, %c0_27, %c0_28] : memref<15x8x128xf32, #tpu.memory_space<vmem>>, vector<1x8x128xf32>
    %109 = vector.shape_cast %108 : vector<1x8x128xf32> to vector<8x128xf32>
    %cst_29 = arith.constant 5.000000e-01 : f32
    %110 = vector.broadcast %cst_29 : f32 to vector<8x128xf32>
    %111 = arith.mulf %109, %110 : vector<8x128xf32>
    %c7 = arith.constant 7 : index
    %c0_30 = arith.constant 0 : index
    %c0_31 = arith.constant 0 : index
    %112 = vector.load %arg1[%c7, %c0_30, %c0_31] : memref<15x8x128xf32, #tpu.memory_space<vmem>>, vector<1x8x128xf32>
    %113 = vector.shape_cast %112 : vector<1x8x128xf32> to vector<8x128xf32>
    %cst_32 = arith.constant 5.000000e-01 : f32
    %114 = vector.broadcast %cst_32 : f32 to vector<8x128xf32>
    %115 = arith.mulf %113, %114 : vector<8x128xf32>
    %c8 = arith.constant 8 : index
    %c0_33 = arith.constant 0 : index
    %c0_34 = arith.constant 0 : index
    %116 = vector.load %arg1[%c8, %c0_33, %c0_34] : memref<15x8x128xf32, #tpu.memory_space<vmem>>, vector<1x8x128xf32>
    %117 = vector.shape_cast %116 : vector<1x8x128xf32> to vector<8x128xf32>
    %cst_35 = arith.constant 5.000000e-01 : f32
    %118 = vector.broadcast %cst_35 : f32 to vector<8x128xf32>
    %119 = arith.mulf %117, %118 : vector<8x128xf32>
    %120 = arith.mulf %20, %74 : vector<8x128xf32>
    %121 = arith.mulf %21, %75 : vector<8x128xf32>
    %122 = arith.addf %120, %121 : vector<8x128xf32>
    %123 = arith.mulf %22, %76 : vector<8x128xf32>
    %124 = arith.addf %122, %123 : vector<8x128xf32>
    %125 = arith.mulf %20, %96 : vector<8x128xf32>
    %126 = arith.mulf %21, %97 : vector<8x128xf32>
    %127 = arith.addf %125, %126 : vector<8x128xf32>
    %128 = arith.mulf %22, %98 : vector<8x128xf32>
    %129 = arith.addf %127, %128 : vector<8x128xf32>
    %130 = arith.mulf %20, %101 : vector<8x128xf32>
    %131 = arith.mulf %21, %104 : vector<8x128xf32>
    %132 = arith.addf %130, %131 : vector<8x128xf32>
    %133 = arith.mulf %22, %107 : vector<8x128xf32>
    %134 = arith.addf %132, %133 : vector<8x128xf32>
    %135 = arith.mulf %42, %74 : vector<8x128xf32>
    %136 = arith.mulf %43, %75 : vector<8x128xf32>
    %137 = arith.addf %135, %136 : vector<8x128xf32>
    %138 = arith.mulf %44, %76 : vector<8x128xf32>
    %139 = arith.addf %137, %138 : vector<8x128xf32>
    %140 = arith.mulf %42, %96 : vector<8x128xf32>
    %141 = arith.mulf %43, %97 : vector<8x128xf32>
    %142 = arith.addf %140, %141 : vector<8x128xf32>
    %143 = arith.mulf %44, %98 : vector<8x128xf32>
    %144 = arith.addf %142, %143 : vector<8x128xf32>
    %145 = arith.mulf %42, %101 : vector<8x128xf32>
    %146 = arith.mulf %43, %104 : vector<8x128xf32>
    %147 = arith.addf %145, %146 : vector<8x128xf32>
    %148 = arith.mulf %44, %107 : vector<8x128xf32>
    %149 = arith.addf %147, %148 : vector<8x128xf32>
    %150 = arith.mulf %47, %74 : vector<8x128xf32>
    %151 = arith.mulf %50, %75 : vector<8x128xf32>
    %152 = arith.addf %150, %151 : vector<8x128xf32>
    %153 = arith.mulf %53, %76 : vector<8x128xf32>
    %154 = arith.addf %152, %153 : vector<8x128xf32>
    %155 = arith.mulf %47, %96 : vector<8x128xf32>
    %156 = arith.mulf %50, %97 : vector<8x128xf32>
    %157 = arith.addf %155, %156 : vector<8x128xf32>
    %158 = arith.mulf %53, %98 : vector<8x128xf32>
    %159 = arith.addf %157, %158 : vector<8x128xf32>
    %160 = arith.mulf %47, %101 : vector<8x128xf32>
    %161 = arith.mulf %50, %104 : vector<8x128xf32>
    %162 = arith.addf %160, %161 : vector<8x128xf32>
    %163 = arith.mulf %53, %107 : vector<8x128xf32>
    %164 = arith.addf %162, %163 : vector<8x128xf32>
    %165 = arith.mulf %111, %111 : vector<8x128xf32>
    %166 = arith.mulf %111, %115 : vector<8x128xf32>
    %167 = arith.mulf %111, %119 : vector<8x128xf32>
    %168 = arith.mulf %115, %115 : vector<8x128xf32>
    %169 = arith.mulf %115, %119 : vector<8x128xf32>
    %170 = arith.mulf %119, %119 : vector<8x128xf32>
    %171 = arith.mulf %165, %124 : vector<8x128xf32>
    %172 = arith.mulf %166, %129 : vector<8x128xf32>
    %173 = arith.mulf %167, %134 : vector<8x128xf32>
    %174 = arith.mulf %166, %139 : vector<8x128xf32>
    %175 = arith.mulf %168, %144 : vector<8x128xf32>
    %176 = arith.mulf %169, %149 : vector<8x128xf32>
    %177 = arith.mulf %167, %154 : vector<8x128xf32>
    %178 = arith.mulf %169, %159 : vector<8x128xf32>
    %179 = arith.mulf %170, %164 : vector<8x128xf32>
    %180 = arith.addf %165, %168 : vector<8x128xf32>
    %181 = arith.addf %180, %170 : vector<8x128xf32>
    %182 = math.absf %177 : vector<8x128xf32>
    %183 = arith.addf %171, %174 : vector<8x128xf32>
    %184 = math.absf %183 : vector<8x128xf32>
    %185 = arith.maximumf %184, %182 : vector<8x128xf32>
    %186 = arith.subf %171, %174 : vector<8x128xf32>
    %187 = math.absf %186 : vector<8x128xf32>
    %188 = arith.maximumf %187, %182 : vector<8x128xf32>
    %189 = arith.addf %185, %188 : vector<8x128xf32>
    %190 = math.absf %178 : vector<8x128xf32>
    %191 = arith.addf %172, %175 : vector<8x128xf32>
    %192 = math.absf %191 : vector<8x128xf32>
    %193 = arith.maximumf %192, %190 : vector<8x128xf32>
    %194 = arith.subf %172, %175 : vector<8x128xf32>
    %195 = math.absf %194 : vector<8x128xf32>
    %196 = arith.maximumf %195, %190 : vector<8x128xf32>
    %197 = arith.addf %193, %196 : vector<8x128xf32>
    %198 = arith.addf %189, %197 : vector<8x128xf32>
    %199 = math.absf %179 : vector<8x128xf32>
    %200 = arith.addf %173, %176 : vector<8x128xf32>
    %201 = math.absf %200 : vector<8x128xf32>
    %202 = arith.maximumf %201, %199 : vector<8x128xf32>
    %203 = arith.subf %173, %176 : vector<8x128xf32>
    %204 = math.absf %203 : vector<8x128xf32>
    %205 = arith.maximumf %204, %199 : vector<8x128xf32>
    %206 = arith.addf %202, %205 : vector<8x128xf32>
    %207 = arith.addf %198, %206 : vector<8x128xf32>
    %208 = math.absf %173 : vector<8x128xf32>
    %209 = arith.addf %171, %172 : vector<8x128xf32>
    %210 = math.absf %209 : vector<8x128xf32>
    %211 = arith.maximumf %210, %208 : vector<8x128xf32>
    %212 = arith.subf %171, %172 : vector<8x128xf32>
    %213 = math.absf %212 : vector<8x128xf32>
    %214 = arith.maximumf %213, %208 : vector<8x128xf32>
    %215 = arith.addf %211, %214 : vector<8x128xf32>
    %216 = math.absf %176 : vector<8x128xf32>
    %217 = arith.addf %174, %175 : vector<8x128xf32>
    %218 = math.absf %217 : vector<8x128xf32>
    %219 = arith.maximumf %218, %216 : vector<8x128xf32>
    %220 = arith.subf %174, %175 : vector<8x128xf32>
    %221 = math.absf %220 : vector<8x128xf32>
    %222 = arith.maximumf %221, %216 : vector<8x128xf32>
    %223 = arith.addf %219, %222 : vector<8x128xf32>
    %224 = arith.addf %215, %223 : vector<8x128xf32>
    %225 = math.absf %179 : vector<8x128xf32>
    %226 = arith.addf %177, %178 : vector<8x128xf32>
    %227 = math.absf %226 : vector<8x128xf32>
    %228 = arith.maximumf %227, %225 : vector<8x128xf32>
    %229 = arith.subf %177, %178 : vector<8x128xf32>
    %230 = math.absf %229 : vector<8x128xf32>
    %231 = arith.maximumf %230, %225 : vector<8x128xf32>
    %232 = arith.addf %228, %231 : vector<8x128xf32>
    %233 = arith.addf %224, %232 : vector<8x128xf32>
    %cst_36 = arith.constant 4.000000e+00 : f32
    %234 = vector.broadcast %cst_36 : f32 to vector<8x128xf32>
    %235 = arith.mulf %234, %181 : vector<8x128xf32>
    %236 = arith.addf %207, %233 : vector<8x128xf32>
    %237 = arith.subf %235, %236 : vector<8x128xf32>
    %c0_37 = arith.constant 0 : index
    %c0_38 = arith.constant 0 : index
    %238 = vector.load %arg2[%c0_37, %c0_38] : memref<8x128xf32, #tpu.memory_space<vmem>>, vector<8x128xf32>
    tpu.vector_store %arg2[%c0_37, %c0_38], %237 {strides = array<i32>} : memref<8x128xf32, #tpu.memory_space<vmem>>, vector<8x128xf32>,
    return
  }
  func.func @transform_0(%arg0: i32) -> (i32, i32, i32) {
    %c0_i32 = arith.constant 0 : i32
    %c0_i32_0 = arith.constant 0 : i32
    %c0_i32_1 = arith.constant 0 : i32
    return %c0_i32, %arg0, %c0_i32_0 : i32, i32, i32
  }
  func.func @transform_1(%arg0: i32) -> (i32, i32) {
    %c0_i32 = arith.constant 0 : i32
    %c0_i32_0 = arith.constant 0 : i32
    return %arg0, %c0_i32 : i32, i32
  }
}

</mosaic_0001>

<llo_original>
// kernel: rot_match_size_metric.1
$region0: #{rot_match_size_metric.1}
  #allocation0 [shape = 'u32[]', space=smem, size = 0x4, offset = 0x4, fixed_abs, tag = 'smem constant byte address 0x4 - core index']
  #allocation1 [shape = 'u32[144,128]{1,0:T(1,128)}', space=vmem, size = 0x12000, scoped, tag = 'internal scratch']
  %s0 = inlined_call_operand.vmem [shape: f32[15,8,128], index: 0, kind: input, shape index: {}]
  %s1 = inlined_call_operand.vmem [shape: f32[8,128], index: 1, kind: output, shape index: {}]
  %s2 = sld [smem:[#allocation0]]
  $region14: #{rot_match_size_metric.1} parent=0
    _
  %s4 = ssub.s32 1, %s2
  %s5 = scalar_select 0, %s4, %s2
  // Predicated region
  $region2: #{rot_match_size_metric.1} parent=0 // pred_check
    _
  $region3: #{rot_match_size_metric.1} parent=0 // pred_check_branch
    %7 = sbr.rel (0) target = $region5
  $region4: #{rot_match_size_metric.1} parent=0 // pred_region
    _
  $region5: #{rot_match_size_metric.1} parent=0 // pred_fallthru
    _
  %v8 = vld [vmem:[%s0] sm:$0xff]
  %s9 = scalar_lea.vmem %s0, 8
  %v10 = vld [vmem:[%s9] sm:$0xff]
  %s11 = scalar_lea.vmem %s0, 16
  %v12 = vld [vmem:[%s11] sm:$0xff]
  %s13 = scalar_lea.vmem %s0, 24
  %v14 = vld [vmem:[%s13] sm:$0xff]
  %s15 = scalar_lea.vmem %s0, 32
  %v16 = vld [vmem:[%s15] sm:$0xff]
  %s17 = scalar_lea.vmem %s0, 40
  %v18 = vld [vmem:[%s17] sm:$0xff]
  %v19 = vmul.f32 %v8, %v8
  %v20 = vmul.f32 %v10, %v10
  %v21 = vadd.f32 %v19, %v20
  %v22 = vmul.f32 %v12, %v12
  %v23 = vadd.f32 %v21, %v22
  %v24 = vadd.f32 %v23, 1e-12
  %v25 = vrsqrt.pop %v24
  %v26 = vmul.f32 %v8, %v25
  %v27 = vmul.f32 %v10, %v25
  %v28 = vmul.f32 %v12, %v25
  %v29 = vmul.f32 %v26, %v14
  %v30 = vmul.f32 %v27, %v16
  %v31 = vadd.f32 %v29, %v30
  %v32 = vmul.f32 %v28, %v18
  %v33 = vadd.f32 %v31, %v32
  %v34 = vmul.f32 %v26, %v33
  %v35 = vmul.f32 %v27, %v33
  %v36 = vmul.f32 %v28, %v33
  %v37 = vsub.f32 %v14, %v34
  %v38 = vsub.f32 %v16, %v35
  %v39 = vsub.f32 %v18, %v36
  %v40 = vmul.f32 %v37, %v37
  %v41 = vmul.f32 %v38, %v38
  %v42 = vadd.f32 %v40, %v41
  %v43 = vmul.f32 %v39, %v39
  %v44 = vadd.f32 %v42, %v43
  %v45 = vadd.f32 %v44, 1e-12
  %v46 = vrsqrt.pop %v45
  %v47 = vmul.f32 %v37, %v46
  %v48 = vmul.f32 %v38, %v46
  %v49 = vmul.f32 %v39, %v46
  %v50 = vmul.f32 %v27, %v49
  %v51 = vmul.f32 %v28, %v48
  %v52 = vsub.f32 %v50, %v51
  %v53 = vmul.f32 %v28, %v47
  %v54 = vmul.f32 %v26, %v49
  %v55 = vsub.f32 %v53, %v54
  %v56 = vmul.f32 %v26, %v48
  %v57 = vmul.f32 %v27, %v47
  %v58 = vsub.f32 %v56, %v57
  %s59 = scalar_lea.vmem %s0, 72
  %v60 = vld [vmem:[%s59] sm:$0xff]
  %s61 = scalar_lea.vmem %s0, 80
  %v62 = vld [vmem:[%s61] sm:$0xff]
  %s63 = scalar_lea.vmem %s0, 88
  %v64 = vld [vmem:[%s63] sm:$0xff]
  %s65 = scalar_lea.vmem %s0, 96
  %v66 = vld [vmem:[%s65] sm:$0xff]
  %s67 = scalar_lea.vmem %s0, 104
  %v68 = vld [vmem:[%s67] sm:$0xff]
  %s69 = scalar_lea.vmem %s0, 112
  %v70 = vld [vmem:[%s69] sm:$0xff]
  %v71 = vmul.f32 %v60, %v60
  %v72 = vmul.f32 %v62, %v62
  %v73 = vadd.f32 %v71, %v72
  %v74 = vmul.f32 %v64, %v64
  %v75 = vadd.f32 %v73, %v74
  %v76 = vadd.f32 %v75, 1e-12
  %v77 = vrsqrt.pop %v76
  %v78 = vmul.f32 %v60, %v77
  %v79 = vmul.f32 %v62, %v77
  %v80 = vmul.f32 %v64, %v77
  %v81 = vmul.f32 %v78, %v66
  %v82 = vmul.f32 %v79, %v68
  %v83 = vadd.f32 %v81, %v82
  %v84 = vmul.f32 %v80, %v70
  %v85 = vadd.f32 %v83, %v84
  %v86 = vmul.f32 %v78, %v85
  %v87 = vmul.f32 %v79, %v85
  %v88 = vmul.f32 %v80, %v85
  %v89 = vsub.f32 %v66, %v86
  %v90 = vsub.f32 %v68, %v87
  %v91 = vsub.f32 %v70, %v88
  %v92 = vmul.f32 %v89, %v89
  %v93 = vmul.f32 %v90, %v90
  %v94 = vadd.f32 %v92, %v93
  %v95 = vmul.f32 %v91, %v91
  %v96 = vadd.f32 %v94, %v95
  %v97 = vadd.f32 %v96, 1e-12
  %v98 = vrsqrt.pop %v97
  %v99 = vmul.f32 %v89, %v98
  %v100 = vmul.f32 %v90, %v98
  %v101 = vmul.f32 %v91, %v98
  %v102 = vmul.f32 %v79, %v101
  %v103 = vmul.f32 %v80, %v100
  %v104 = vsub.f32 %v102, %v103
  %v105 = vmul.f32 %v80, %v99
  %v106 = vmul.f32 %v78, %v101
  %v107 = vsub.f32 %v105, %v106
  %v108 = vmul.f32 %v78, %v100
  %v109 = vmul.f32 %v79, %v99
  %v110 = vsub.f32 %v108, %v109
  %s111 = scalar_lea.vmem %s0, 48
  %v112 = vld [vmem:[%s111] sm:$0xff]
  %v113 = vmul.f32 %v112, 0.5
  %s114 = scalar_lea.vmem %s0, 56
  %v115 = vld [vmem:[%s114] sm:$0xff]
  %v116 = vmul.f32 %v115, 0.5
  %s117 = scalar_lea.vmem %s0, 64
  %v118 = vld [vmem:[%s117] sm:$0xff]
  %v119 = vmul.f32 %v118, 0.5
  %v120 = vmul.f32 %v26, %v78
  %v121 = vmul.f32 %v27, %v79
  %v122 = vadd.f32 %v120, %v121
  %v123 = vmul.f32 %v28, %v80
  %v124 = vadd.f32 %v122, %v123
  %v125 = vmul.f32 %v26, %v99
  %v126 = vmul.f32 %v27, %v100
  %v127 = vadd.f32 %v125, %v126
  %v128 = vmul.f32 %v28, %v101
  %v129 = vadd.f32 %v127, %v128
  %v130 = vmul.f32 %v26, %v104
  %v131 = vmul.f32 %v27, %v107
  %v132 = vadd.f32 %v130, %v131
  %v133 = vmul.f32 %v28, %v110
  %v134 = vadd.f32 %v132, %v133
  %v135 = vmul.f32 %v47, %v78
  %v136 = vmul.f32 %v48, %v79
  %v137 = vadd.f32 %v135, %v136
  %v138 = vmul.f32 %v49, %v80
  %v139 = vadd.f32 %v137, %v138
  %v140 = vmul.f32 %v47, %v99
  %v141 = vmul.f32 %v48, %v100
  %v142 = vadd.f32 %v140, %v141
  %v143 = vmul.f32 %v49, %v101
  %v144 = vadd.f32 %v142, %v143
  %v145 = vmul.f32 %v47, %v104
  %v146 = vmul.f32 %v48, %v107
  %v147 = vadd.f32 %v145, %v146
  %v148 = vmul.f32 %v49, %v110
  %v149 = vadd.f32 %v147, %v148
  %v150 = vmul.f32 %v52, %v78
  %v151 = vmul.f32 %v55, %v79
  %v152 = vadd.f32 %v150, %v151
  %v153 = vmul.f32 %v58, %v80
  %v154 = vadd.f32 %v152, %v153
  %v155 = vmul.f32 %v52, %v99
  %v156 = vmul.f32 %v55, %v100
  %v157 = vadd.f32 %v155, %v156
  %v158 = vmul.f32 %v58, %v101
  %v159 = vadd.f32 %v157, %v158
  %v160 = vmul.f32 %v52, %v104
  %v161 = vmul.f32 %v55, %v107
  %v162 = vadd.f32 %v160, %v161
  %v163 = vmul.f32 %v58, %v110
  %v164 = vadd.f32 %v162, %v163
  %v165 = vmul.f32 %v113, %v113
  %v166 = vmul.f32 %v113, %v116
  %v167 = vmul.f32 %v113, %v119
  %v168 = vmul.f32 %v116, %v116
  %v169 = vmul.f32 %v116, %v119
  %v170 = vmul.f32 %v119, %v119
  %v171 = vmul.f32 %v165, %v124
  %v172 = vmul.f32 %v166, %v129
  %v173 = vmul.f32 %v167, %v134
  %v174 = vmul.f32 %v166, %v139
  %v175 = vmul.f32 %v168, %v144
  %v176 = vmul.f32 %v169, %v149
  %v177 = vmul.f32 %v167, %v154
  %v178 = vmul.f32 %v169, %v159
  %v179 = vmul.f32 %v170, %v164
  %v180 = vadd.f32 %v165, %v168
  %v181 = vadd.f32 %v180, %v170
  %v182 = vand.u32 2147483647, %v177
  %v183 = vadd.f32 %v171, %v174
  %v184 = vand.u32 2147483647, %v183
  %v185 = vmax.f32 %v184, %v182
  %v186 = vsub.f32 %v171, %v174
  %v187 = vand.u32 2147483647, %v186
  %v188 = vmax.f32 %v187, %v182
  %v189 = vadd.f32 %v185, %v188
  %v190 = vand.u32 2147483647, %v178
  %v191 = vadd.f32 %v172, %v175
  %v192 = vand.u32 2147483647, %v191
  %v193 = vmax.f32 %v192, %v190
  %v194 = vsub.f32 %v172, %v175
  %v195 = vand.u32 2147483647, %v194
  %v196 = vmax.f32 %v195, %v190
  %v197 = vadd.f32 %v193, %v196
  %v198 = vadd.f32 %v189, %v197
  %v199 = vand.u32 2147483647, %v179
  %v200 = vadd.f32 %v173, %v176
  %v201 = vand.u32 2147483647, %v200
  %v202 = vmax.f32 %v201, %v199
  %v203 = vsub.f32 %v173, %v176
  %v204 = vand.u32 2147483647, %v203
  %v205 = vmax.f32 %v204, %v199
  %v206 = vadd.f32 %v202, %v205
  %v207 = vadd.f32 %v198, %v206
  %v208 = vand.u32 2147483647, %v173
  %v209 = vadd.f32 %v171, %v172
  %v210 = vand.u32 2147483647, %v209
  %v211 = vmax.f32 %v210, %v208
  %v212 = vsub.f32 %v171, %v172
  %v213 = vand.u32 2147483647, %v212
  %v214 = vmax.f32 %v213, %v208
  %v215 = vadd.f32 %v211, %v214
  %v216 = vand.u32 2147483647, %v176
  %v217 = vadd.f32 %v174, %v175
  %v218 = vand.u32 2147483647, %v217
  %v219 = vmax.f32 %v218, %v216
  %v220 = vsub.f32 %v174, %v175
  %v221 = vand.u32 2147483647, %v220
  %v222 = vmax.f32 %v221, %v216
  %v223 = vadd.f32 %v219, %v222
  %v224 = vadd.f32 %v215, %v223
  %v225 = vadd.f32 %v177, %v178
  %v226 = vand.u32 2147483647, %v225
  %v227 = vmax.f32 %v226, %v199
  %v228 = vsub.f32 %v177, %v178
  %v229 = vand.u32 2147483647, %v228
  %v230 = vmax.f32 %v229, %v199
  %v231 = vadd.f32 %v227, %v230
  %v232 = vadd.f32 %v224, %v231
  %v233 = vmul.f32 %v181, 4.0
  %v234 = vadd.f32 %v207, %v232
  %v235 = vsub.f32 %v233, %v234
  %236 = vst [vmem:[%s1] sm:$0xff] %v235
  // Predicated region
  $region6: #{rot_match_size_metric.1} parent=0 // pred_check
    _
  $region7: #{rot_match_size_metric.1} parent=0 // pred_check_branch
    %238 = sbr.rel (0) target = $region9
  $region8: #{rot_match_size_metric.1} parent=0 // pred_region
    _
  $region9: #{rot_match_size_metric.1} parent=0 // pred_fallthru
    _
  // Predicated region
  $region10: #{rot_match_size_metric.1} parent=0 // pred_check
    _
  $region11: #{rot_match_size_metric.1} parent=0 // pred_check_branch
    %240 = sbr.rel (0) target = $region13
  $region12: #{rot_match_size_metric.1} parent=0 // pred_region
    _
  $region13: #{rot_match_size_metric.1} parent=0 // pred_fallthru
    _

</llo_original>
